<compile_context>
chip_gen: v5e
topology: v5e:2x2
jax: 0.10.0
libtpu: 0.0.40
codegen_flags: <defaults>
</compile_context>

<pallas_src>
import functools

import jax
import jax.numpy as jnp
from jax import lax
from jax.experimental import pallas as pl
from jax.experimental.pallas import tpu as pltpu


def _vmem_spec():
    # Whole-array block resident in VMEM (all shapes here are tiny).
    return pl.BlockSpec(memory_space=pltpu.MemorySpace.VMEM)


def bilstm_fc_kernel(gin_ref, w_bd_ref, w_fc_ref, b_fc_ref, out_ref, ys_ref):
    """Fused bidirectional LSTM recurrence + Linear + log_softmax.

    gin_ref : (T, B, 8H) gate pre-activations, columns [i_f i_r f_f f_r o_f o_r g_f g_r];
              forward columns come from time s, reverse columns from time T-1-s.
    w_bd_ref: (2H, 8H) block-diagonal (gate-permuted) recurrent weights.
    ys_ref  : (T, B, 2H) VMEM scratch holding [h_fwd(t) | h_rev(t)] per time t.
    out_ref : (T*B, O_pad) log-probabilities in TIME-major row order (t*B + b).
    """
    T, B, G = gin_ref.shape
    H = G // 8
    H2 = 2 * H

    w_bd = w_bd_ref[...]                              # (2H, 8H), hoisted out of loop
    # TODO(synk): on v5e the RHS could stay in MXU weight regs across all T steps
    # via pltpu.matmul_push_rhs / matmul_acc_lhs; low priority at this size.

    hc = jnp.zeros((B, H2), jnp.float32)              # [h_f | h_r]
    cc = jnp.zeros((B, H2), jnp.float32)              # [c_f | c_r]

    # Fully unrolled time loop (T static & small).
    # TODO(synk): if T grows beyond ~16, switch to lax.fori_loop(..., unroll=True)
    # (the scratch-based history already caps live ranges).
    for s in range(T):
        gates = gin_ref[s] + jnp.dot(hc, w_bd,
                                     preferred_element_type=jnp.float32)  # (B, 8H)
        sig = jax.nn.sigmoid(gates[:, 0:6 * H])       # one EUP stream: i|f|o both dirs
        g = jnp.tanh(gates[:, 6 * H:8 * H])           # one EUP stream: g both dirs
        cc = sig[:, 2 * H:4 * H] * cc + sig[:, 0:2 * H] * g
        hc = sig[:, 4 * H:6 * H] * jnp.tanh(cc)
        ys_ref[s, :, 0:H] = hc[:, 0:H]                # forward hidden -> output time s
        ys_ref[T - 1 - s, :, H:H2] = hc[:, H:H2]      # reverse hidden -> output time T-1-s

    # ---- Fused FC + log_softmax on a lane-dense 128-padded tile.
    y2d = ys_ref[...].reshape(T * B, H2)              # time-major rows (t*B + b)
    logits = (jnp.dot(y2d, w_fc_ref[...], preferred_element_type=jnp.float32)
              + b_fc_ref[...])                        # (T*B, O_pad)
    m = jnp.max(logits, axis=1, keepdims=True)
    zc = logits - m
    out_ref[...] = zc - jnp.log(jnp.sum(jnp.exp(zc), axis=1, keepdims=True))


@functools.partial(jax.jit, static_argnames="out_dim")
def lstm_model_forward(X, p, out_dim):
    B, T = X.shape
    H2, G = p["w_bd"].shape
    O_pad = p["w_fc_pad"].shape[1]

    # Embedding + input projection fused into a gather of precomputed (V, 8H)
    # tables (wrapper-side XLA glue; the reverse direction's time flip is folded
    # into the second gather so the kernel indexes gin purely on the leading axis).
    gin = (jnp.take(p["gate_table_f"], X.T, axis=0)
           + jnp.take(p["gate_table_r"], X[:, ::-1].T, axis=0))   # (T, B, 8H)

    # TODO(synk): once B is non-trivial, add a batch grid axis with batch-tile
    # BlockSpecs and dimension_semantics=("parallel",) to use both v7x TensorCores.
    out_pad = pl.pallas_call(
        bilstm_fc_kernel,
        out_shape=jax.ShapeDtypeStruct((T * B, O_pad), jnp.float32),
        in_specs=[_vmem_spec()] * 4,
        out_specs=_vmem_spec(),
        scratch_shapes=[pltpu.VMEM((T, B, H2), jnp.float32)],
        compiler_params=pltpu.CompilerParams(vmem_limit_bytes=16 << 20),
    )(gin, p["w_bd"], p["w_fc_pad"], p["b_fc_pad"])

    # Kernel rows are time-major (t*B + b); PyTorch batch_first reshape(-1, 2H)
    # is b*T + t -> cheap lane-dense transpose here, then slice off lane padding.
    out = out_pad.reshape(T, B, O_pad).swapaxes(0, 1).reshape(B * T, O_pad)
    return out[:, :out_dim]


def init_params(key, vocab_size, embed_dim, hidden_dim, output_dim):
    """PyTorch-layout parameters (wih (4H,E), whh (4H,H), b = b_ih+b_hh, fc (O,2H))."""
    ks = jax.random.split(key, 10)
    s = 1.0 / jnp.sqrt(hidden_dim)
    u = lambda k, shape: jax.random.uniform(k, shape, jnp.float32, -s, s)
    return {
        "embedding": jax.random.normal(ks[0], (vocab_size, embed_dim), jnp.float32),
        "wih_f": u(ks[1], (4 * hidden_dim, embed_dim)),
        "whh_f": u(ks[2], (4 * hidden_dim, hidden_dim)),
        "b_f": u(ks[3], (1, 4 * hidden_dim)) + u(ks[4], (1, 4 * hidden_dim)),
        "wih_r": u(ks[5], (4 * hidden_dim, embed_dim)),
        "whh_r": u(ks[6], (4 * hidden_dim, hidden_dim)),
        "b_r": u(ks[7], (1, 4 * hidden_dim)) + u(ks[8], (1, 4 * hidden_dim)),
        "w_fc": u(ks[9], (output_dim, 2 * hidden_dim)),
        "b_fc": jnp.zeros((1, output_dim), jnp.float32),
    }


# (PyTorch gate block [i,f,g,o]) -> (destination H-block pair) in the combined
# layout [i_f i_r f_f f_r o_f o_r g_f g_r].
_GATE_DEST = ((0, 0), (1, 2), (3, 4), (2, 6))   # i->0, f->2, o->4, g->6 (+direction)


def _scatter_gates(w, direction, H):
    """Scatter PyTorch-order [i|f|g|o] gate columns of `w` (rows, 4H) into the
    kernel's combined (rows, 8H) layout for the given direction (0=fwd, 1=rev)."""
    out = jnp.zeros((w.shape[0], 8 * H), w.dtype)
    for src, dst in _GATE_DEST:
        d = dst + direction
        out = out.at[:, d * H:(d + 1) * H].set(w[:, src * H:(src + 1) * H])
    return out


def pack_params(p):
    """One-time re-layout: gate-permuted block-diagonal recurrent weight, fused
    embedding+input-projection gate tables, lane-padded FC (pad cols biased -1e30)."""
    H = p["whh_f"].shape[1]
    O = p["w_fc"].shape[0]
    o_pad = ((O + 127) // 128) * 128
    hi = lax.Precision.HIGHEST

    # TODO(synk): for large vocabularies the (V, 8H) tables blow up memory — fall
    # back to an in-kernel hoisted (T*B,E)x(E,8H) projection in that regime.
    tbl_f = (jnp.dot(p["embedding"], _scatter_gates(p["wih_f"].T, 0, H), precision=hi)
             + _scatter_gates(p["b_f"], 0, H))                       # (V, 8H)
    tbl_r = (jnp.dot(p["embedding"], _scatter_gates(p["wih_r"].T, 1, H), precision=hi)
             + _scatter_gates(p["b_r"], 1, H))                       # (V, 8H)

    # Block-diagonal recurrent weight: h_cat=[h_f|h_r] @ w_bd -> all 8H gates.
    w_bd = jnp.concatenate([_scatter_gates(p["whh_f"].T, 0, H),
                            _scatter_gates(p["whh_r"].T, 1, H)], axis=0)  # (2H, 8H)

    # TODO(synk): at production sizes cast tables/w_bd/w_fc operands to bf16 (keep
    # f32 accumulation; keep the -1e30 pad bias in f32) for the v6e/v7x MXU path.
    w_fc_pad = jnp.zeros((2 * H, o_pad), jnp.float32).at[:, :O].set(p["w_fc"].T)
    b_fc_pad = jnp.full((1, o_pad), -1e30, jnp.float32).at[:, :O].set(p["b_fc"])
    return {"gate_table_f": tbl_f, "gate_table_r": tbl_r, "w_bd": w_bd,
            "w_fc_pad": w_fc_pad, "b_fc_pad": b_fc_pad}


def _reference_forward(X, p):
    """Pure-JAX reference mirroring PyTorch semantics (self-check only)."""
    emb = p["embedding"]
    H = p["whh_f"].shape[1]
    x = jnp.take(emb, X, axis=0)                                        # (B, T, E)
    B, T, _ = x.shape
    hi = lax.Precision.HIGHEST

    def run(xd, wih, whh, b):
        def step(carry, x_t):
            h, c = carry
            gates = (jnp.dot(x_t, wih.T, precision=hi)
                     + jnp.dot(h, whh.T, precision=hi) + b[0])
            i = jax.nn.sigmoid(gates[:, 0:H])
            f = jax.nn.sigmoid(gates[:, H:2 * H])
            g = jnp.tanh(gates[:, 2 * H:3 * H])
            o = jax.nn.sigmoid(gates[:, 3 * H:4 * H])
            c = f * c + i * g
            h = o * jnp.tanh(c)
            return (h, c), h
        z = jnp.zeros((B, H), jnp.float32)
        _, hs = lax.scan(step, (z, z), jnp.transpose(xd, (1, 0, 2)))
        return jnp.transpose(hs, (1, 0, 2))                             # (B, T, H)

    out_f = run(x, p["wih_f"], p["whh_f"], p["b_f"])
    out_r = run(x[:, ::-1], p["wih_r"], p["whh_r"], p["b_r"])[:, ::-1]
    y = jnp.concatenate([out_f, out_r], axis=-1).reshape(B * T, 2 * H)
    logits = jnp.dot(y, p["w_fc"].T, precision=hi) + p["b_fc"][0]
    return jax.nn.log_softmax(logits, axis=1)


if __name__ == "__main__":
    VOCAB, EMBED, HIDDEN, OUT = 20, 16, 32, 10
    B, T = 2, 8

    key = jax.random.PRNGKey(0)
    k_param, k_tok = jax.random.split(key)
    params = init_params(k_param, VOCAB, EMBED, HIDDEN, OUT)
    packed = pack_params(params)
    X = jax.random.randint(k_tok, (B, T), 0, VOCAB, dtype=jnp.int32)

    log_probs = lstm_model_forward(X, packed, out_dim=OUT)
    log_probs = jax.block_until_ready(log_probs)

    assert log_probs.shape == (B * T, OUT)
    assert bool(jnp.all(jnp.isfinite(log_probs)))
    # rows of exp(log_softmax) must sum to 1
    assert bool(jnp.allclose(jnp.sum(jnp.exp(log_probs), axis=1), 1.0, atol=1e-4))
    # match the pure-JAX reference of the PyTorch forward
    ref = _reference_forward(X, params)
    assert bool(jnp.allclose(log_probs, ref, atol=5e-3, rtol=5e-3))
    print("KERNEL_OK")
</pallas_src>

<mosaic_0001>
module attributes {stable_mosaic.version = 11 : i64} {
  func.func @bilstm_fc_kernel(%arg0: memref<8x2x256xf32, #tpu.memory_space<vmem>>, %arg1: memref<64x256xf32, #tpu.memory_space<vmem>>, %arg2: memref<64x128xf32, #tpu.memory_space<vmem>>, %arg3: memref<1x128xf32, #tpu.memory_space<vmem>>, %arg4: memref<16x128xf32, #tpu.memory_space<vmem>>, %arg5: memref<8x2x64xf32, #tpu.memory_space<vmem>>) attributes {dimension_semantics = [], scalar_prefetch = 0 : i64, scratch_operands = 1 : i64, tpu.core_type = #tpu.core_type<tc>} {
    %c0 = arith.constant 0 : index
    %c0_0 = arith.constant 0 : index
    %0 = vector.load %arg1[%c0, %c0_0] : memref<64x256xf32, #tpu.memory_space<vmem>>, vector<64x256xf32>
    %cst = arith.constant 0.000000e+00 : f32
    %1 = vector.broadcast %cst : f32 to vector<2x64xf32>
    %cst_1 = arith.constant 0.000000e+00 : f32
    %2 = vector.broadcast %cst_1 : f32 to vector<2x64xf32>
    %c0_2 = arith.constant 0 : index
    %c0_3 = arith.constant 0 : index
    %c0_4 = arith.constant 0 : index
    %3 = vector.load %arg0[%c0_2, %c0_3, %c0_4] : memref<8x2x256xf32, #tpu.memory_space<vmem>>, vector<1x2x256xf32>
    %4 = vector.shape_cast %3 : vector<1x2x256xf32> to vector<2x256xf32>
    %cst_5 = arith.constant dense<0.000000e+00> : vector<2x256xf32>
    %5 = tpu.matmul %1, %0, %cst_5 {dimension_numbers = #tpu.dot_dimension_numbers<[1], [0], [0], [1], [0, 0, 1, 1], [], []>} : vector<2x64xf32>, vector<64x256xf32>, vector<2x256xf32> -> vector<2x256xf32>
    %6 = arith.addf %4, %5 : vector<2x256xf32>
    %7 = vector.extract_strided_slice %6 {offsets = [0, 0], sizes = [2, 192], strides = [1, 1]} : vector<2x256xf32> to vector<2x192xf32>
    %8 = arith.negf %7 : vector<2x192xf32>
    %9 = math.exp %8 : vector<2x192xf32>
    %cst_6 = arith.constant 1.000000e+00 : f32
    %10 = vector.broadcast %cst_6 : f32 to vector<2x192xf32>
    %11 = arith.addf %10, %9 : vector<2x192xf32>
    %12 = arith.divf %10, %11 : vector<2x192xf32>
    %13 = vector.extract_strided_slice %6 {offsets = [0, 192], sizes = [2, 64], strides = [1, 1]} : vector<2x256xf32> to vector<2x64xf32>
    %14 = math.tanh %13 : vector<2x64xf32>
    %15 = vector.extract_strided_slice %12 {offsets = [0, 64], sizes = [2, 64], strides = [1, 1]} : vector<2x192xf32> to vector<2x64xf32>
    %16 = arith.mulf %15, %2 : vector<2x64xf32>
    %17 = vector.extract_strided_slice %12 {offsets = [0, 0], sizes = [2, 64], strides = [1, 1]} : vector<2x192xf32> to vector<2x64xf32>
    %18 = arith.mulf %17, %14 : vector<2x64xf32>
    %19 = arith.addf %16, %18 : vector<2x64xf32>
    %20 = vector.extract_strided_slice %12 {offsets = [0, 128], sizes = [2, 64], strides = [1, 1]} : vector<2x192xf32> to vector<2x64xf32>
    %21 = math.tanh %19 : vector<2x64xf32>
    %22 = arith.mulf %20, %21 : vector<2x64xf32>
    %23 = vector.extract_strided_slice %22 {offsets = [0, 0], sizes = [2, 32], strides = [1, 1]} : vector<2x64xf32> to vector<2x32xf32>
    %c0_7 = arith.constant 0 : index
    %c0_8 = arith.constant 0 : index
    %c0_9 = arith.constant 0 : index
    %24 = vector.load %arg5[%c0_7, %c0_8, %c0_9] : memref<8x2x64xf32, #tpu.memory_space<vmem>>, vector<1x2x32xf32>
    %25 = vector.shape_cast %24 : vector<1x2x32xf32> to vector<2x32xf32>
    %26 = vector.shape_cast %23 : vector<2x32xf32> to vector<1x2x32xf32>
    tpu.vector_store %arg5[%c0_7, %c0_8, %c0_9], %26 {strides = array<i32>} : memref<8x2x64xf32, #tpu.memory_space<vmem>>, vector<1x2x32xf32>,
    %27 = vector.extract_strided_slice %22 {offsets = [0, 32], sizes = [2, 32], strides = [1, 1]} : vector<2x64xf32> to vector<2x32xf32>
    %c7 = arith.constant 7 : index
    %c0_10 = arith.constant 0 : index
    %c32 = arith.constant 32 : index
    %28 = vector.load %arg5[%c7, %c0_10, %c32] : memref<8x2x64xf32, #tpu.memory_space<vmem>>, vector<1x2x32xf32>
    %29 = vector.shape_cast %28 : vector<1x2x32xf32> to vector<2x32xf32>
    %30 = vector.shape_cast %27 : vector<2x32xf32> to vector<1x2x32xf32>
    tpu.vector_store %arg5[%c7, %c0_10, %c32], %30 {strides = array<i32>} : memref<8x2x64xf32, #tpu.memory_space<vmem>>, vector<1x2x32xf32>,
    %c1 = arith.constant 1 : index
    %c0_11 = arith.constant 0 : index
    %c0_12 = arith.constant 0 : index
    %31 = vector.load %arg0[%c1, %c0_11, %c0_12] : memref<8x2x256xf32, #tpu.memory_space<vmem>>, vector<1x2x256xf32>
    %32 = vector.shape_cast %31 : vector<1x2x256xf32> to vector<2x256xf32>
    %cst_13 = arith.constant dense<0.000000e+00> : vector<2x256xf32>
    %33 = tpu.matmul %22, %0, %cst_13 {dimension_numbers = #tpu.dot_dimension_numbers<[1], [0], [0], [1], [0, 0, 1, 1], [], []>} : vector<2x64xf32>, vector<64x256xf32>, vector<2x256xf32> -> vector<2x256xf32>
    %34 = arith.addf %32, %33 : vector<2x256xf32>
    %35 = vector.extract_strided_slice %34 {offsets = [0, 0], sizes = [2, 192], strides = [1, 1]} : vector<2x256xf32> to vector<2x192xf32>
    %36 = arith.negf %35 : vector<2x192xf32>
    %37 = math.exp %36 : vector<2x192xf32>
    %cst_14 = arith.constant 1.000000e+00 : f32
    %38 = vector.broadcast %cst_14 : f32 to vector<2x192xf32>
    %39 = arith.addf %38, %37 : vector<2x192xf32>
    %40 = arith.divf %38, %39 : vector<2x192xf32>
    %41 = vector.extract_strided_slice %34 {offsets = [0, 192], sizes = [2, 64], strides = [1, 1]} : vector<2x256xf32> to vector<2x64xf32>
    %42 = math.tanh %41 : vector<2x64xf32>
    %43 = vector.extract_strided_slice %40 {offsets = [0, 64], sizes = [2, 64], strides = [1, 1]} : vector<2x192xf32> to vector<2x64xf32>
    %44 = arith.mulf %43, %19 : vector<2x64xf32>
    %45 = vector.extract_strided_slice %40 {offsets = [0, 0], sizes = [2, 64], strides = [1, 1]} : vector<2x192xf32> to vector<2x64xf32>
    %46 = arith.mulf %45, %42 : vector<2x64xf32>
    %47 = arith.addf %44, %46 : vector<2x64xf32>
    %48 = vector.extract_strided_slice %40 {offsets = [0, 128], sizes = [2, 64], strides = [1, 1]} : vector<2x192xf32> to vector<2x64xf32>
    %49 = math.tanh %47 : vector<2x64xf32>
    %50 = arith.mulf %48, %49 : vector<2x64xf32>
    %51 = vector.extract_strided_slice %50 {offsets = [0, 0], sizes = [2, 32], strides = [1, 1]} : vector<2x64xf32> to vector<2x32xf32>
    %c1_15 = arith.constant 1 : index
    %c0_16 = arith.constant 0 : index
    %c0_17 = arith.constant 0 : index
    %52 = vector.load %arg5[%c1_15, %c0_16, %c0_17] : memref<8x2x64xf32, #tpu.memory_space<vmem>>, vector<1x2x32xf32>
    %53 = vector.shape_cast %52 : vector<1x2x32xf32> to vector<2x32xf32>
    %54 = vector.shape_cast %51 : vector<2x32xf32> to vector<1x2x32xf32>
    tpu.vector_store %arg5[%c1_15, %c0_16, %c0_17], %54 {strides = array<i32>} : memref<8x2x64xf32, #tpu.memory_space<vmem>>, vector<1x2x32xf32>,
    %55 = vector.extract_strided_slice %50 {offsets = [0, 32], sizes = [2, 32], strides = [1, 1]} : vector<2x64xf32> to vector<2x32xf32>
    %c6 = arith.constant 6 : index
    %c0_18 = arith.constant 0 : index
    %c32_19 = arith.constant 32 : index
    %56 = vector.load %arg5[%c6, %c0_18, %c32_19] : memref<8x2x64xf32, #tpu.memory_space<vmem>>, vector<1x2x32xf32>
    %57 = vector.shape_cast %56 : vector<1x2x32xf32> to vector<2x32xf32>
    %58 = vector.shape_cast %55 : vector<2x32xf32> to vector<1x2x32xf32>
    tpu.vector_store %arg5[%c6, %c0_18, %c32_19], %58 {strides = array<i32>} : memref<8x2x64xf32, #tpu.memory_space<vmem>>, vector<1x2x32xf32>,
    %c2 = arith.constant 2 : index
    %c0_20 = arith.constant 0 : index
    %c0_21 = arith.constant 0 : index
    %59 = vector.load %arg0[%c2, %c0_20, %c0_21] : memref<8x2x256xf32, #tpu.memory_space<vmem>>, vector<1x2x256xf32>
    %60 = vector.shape_cast %59 : vector<1x2x256xf32> to vector<2x256xf32>
    %cst_22 = arith.constant dense<0.000000e+00> : vector<2x256xf32>
    %61 = tpu.matmul %50, %0, %cst_22 {dimension_numbers = #tpu.dot_dimension_numbers<[1], [0], [0], [1], [0, 0, 1, 1], [], []>} : vector<2x64xf32>, vector<64x256xf32>, vector<2x256xf32> -> vector<2x256xf32>
    %62 = arith.addf %60, %61 : vector<2x256xf32>
    %63 = vector.extract_strided_slice %62 {offsets = [0, 0], sizes = [2, 192], strides = [1, 1]} : vector<2x256xf32> to vector<2x192xf32>
    %64 = arith.negf %63 : vector<2x192xf32>
    %65 = math.exp %64 : vector<2x192xf32>
    %cst_23 = arith.constant 1.000000e+00 : f32
    %66 = vector.broadcast %cst_23 : f32 to vector<2x192xf32>
    %67 = arith.addf %66, %65 : vector<2x192xf32>
    %68 = arith.divf %66, %67 : vector<2x192xf32>
    %69 = vector.extract_strided_slice %62 {offsets = [0, 192], sizes = [2, 64], strides = [1, 1]} : vector<2x256xf32> to vector<2x64xf32>
    %70 = math.tanh %69 : vector<2x64xf32>
    %71 = vector.extract_strided_slice %68 {offsets = [0, 64], sizes = [2, 64], strides = [1, 1]} : vector<2x192xf32> to vector<2x64xf32>
    %72 = arith.mulf %71, %47 : vector<2x64xf32>
    %73 = vector.extract_strided_slice %68 {offsets = [0, 0], sizes = [2, 64], strides = [1, 1]} : vector<2x192xf32> to vector<2x64xf32>
    %74 = arith.mulf %73, %70 : vector<2x64xf32>
    %75 = arith.addf %72, %74 : vector<2x64xf32>
    %76 = vector.extract_strided_slice %68 {offsets = [0, 128], sizes = [2, 64], strides = [1, 1]} : vector<2x192xf32> to vector<2x64xf32>
    %77 = math.tanh %75 : vector<2x64xf32>
    %78 = arith.mulf %76, %77 : vector<2x64xf32>
    %79 = vector.extract_strided_slice %78 {offsets = [0, 0], sizes = [2, 32], strides = [1, 1]} : vector<2x64xf32> to vector<2x32xf32>
    %c2_24 = arith.constant 2 : index
    %c0_25 = arith.constant 0 : index
    %c0_26 = arith.constant 0 : index
    %80 = vector.load %arg5[%c2_24, %c0_25, %c0_26] : memref<8x2x64xf32, #tpu.memory_space<vmem>>, vector<1x2x32xf32>
    %81 = vector.shape_cast %80 : vector<1x2x32xf32> to vector<2x32xf32>
    %82 = vector.shape_cast %79 : vector<2x32xf32> to vector<1x2x32xf32>
    tpu.vector_store %arg5[%c2_24, %c0_25, %c0_26], %82 {strides = array<i32>} : memref<8x2x64xf32, #tpu.memory_space<vmem>>, vector<1x2x32xf32>,
    %83 = vector.extract_strided_slice %78 {offsets = [0, 32], sizes = [2, 32], strides = [1, 1]} : vector<2x64xf32> to vector<2x32xf32>
    %c5 = arith.constant 5 : index
    %c0_27 = arith.constant 0 : index
    %c32_28 = arith.constant 32 : index
    %84 = vector.load %arg5[%c5, %c0_27, %c32_28] : memref<8x2x64xf32, #tpu.memory_space<vmem>>, vector<1x2x32xf32>
    %85 = vector.shape_cast %84 : vector<1x2x32xf32> to vector<2x32xf32>
    %86 = vector.shape_cast %83 : vector<2x32xf32> to vector<1x2x32xf32>
    tpu.vector_store %arg5[%c5, %c0_27, %c32_28], %86 {strides = array<i32>} : memref<8x2x64xf32, #tpu.memory_space<vmem>>, vector<1x2x32xf32>,
    %c3 = arith.constant 3 : index
    %c0_29 = arith.constant 0 : index
    %c0_30 = arith.constant 0 : index
    %87 = vector.load %arg0[%c3, %c0_29, %c0_30] : memref<8x2x256xf32, #tpu.memory_space<vmem>>, vector<1x2x256xf32>
    %88 = vector.shape_cast %87 : vector<1x2x256xf32> to vector<2x256xf32>
    %cst_31 = arith.constant dense<0.000000e+00> : vector<2x256xf32>
    %89 = tpu.matmul %78, %0, %cst_31 {dimension_numbers = #tpu.dot_dimension_numbers<[1], [0], [0], [1], [0, 0, 1, 1], [], []>} : vector<2x64xf32>, vector<64x256xf32>, vector<2x256xf32> -> vector<2x256xf32>
    %90 = arith.addf %88, %89 : vector<2x256xf32>
    %91 = vector.extract_strided_slice %90 {offsets = [0, 0], sizes = [2, 192], strides = [1, 1]} : vector<2x256xf32> to vector<2x192xf32>
    %92 = arith.negf %91 : vector<2x192xf32>
    %93 = math.exp %92 : vector<2x192xf32>
    %cst_32 = arith.constant 1.000000e+00 : f32
    %94 = vector.broadcast %cst_32 : f32 to vector<2x192xf32>
    %95 = arith.addf %94, %93 : vector<2x192xf32>
    %96 = arith.divf %94, %95 : vector<2x192xf32>
    %97 = vector.extract_strided_slice %90 {offsets = [0, 192], sizes = [2, 64], strides = [1, 1]} : vector<2x256xf32> to vector<2x64xf32>
    %98 = math.tanh %97 : vector<2x64xf32>
    %99 = vector.extract_strided_slice %96 {offsets = [0, 64], sizes = [2, 64], strides = [1, 1]} : vector<2x192xf32> to vector<2x64xf32>
    %100 = arith.mulf %99, %75 : vector<2x64xf32>
    %101 = vector.extract_strided_slice %96 {offsets = [0, 0], sizes = [2, 64], strides = [1, 1]} : vector<2x192xf32> to vector<2x64xf32>
    %102 = arith.mulf %101, %98 : vector<2x64xf32>
    %103 = arith.addf %100, %102 : vector<2x64xf32>
    %104 = vector.extract_strided_slice %96 {offsets = [0, 128], sizes = [2, 64], strides = [1, 1]} : vector<2x192xf32> to vector<2x64xf32>
    %105 = math.tanh %103 : vector<2x64xf32>
    %106 = arith.mulf %104, %105 : vector<2x64xf32>
    %107 = vector.extract_strided_slice %106 {offsets = [0, 0], sizes = [2, 32], strides = [1, 1]} : vector<2x64xf32> to vector<2x32xf32>
    %c3_33 = arith.constant 3 : index
    %c0_34 = arith.constant 0 : index
    %c0_35 = arith.constant 0 : index
    %108 = vector.load %arg5[%c3_33, %c0_34, %c0_35] : memref<8x2x64xf32, #tpu.memory_space<vmem>>, vector<1x2x32xf32>
    %109 = vector.shape_cast %108 : vector<1x2x32xf32> to vector<2x32xf32>
    %110 = vector.shape_cast %107 : vector<2x32xf32> to vector<1x2x32xf32>
    tpu.vector_store %arg5[%c3_33, %c0_34, %c0_35], %110 {strides = array<i32>} : memref<8x2x64xf32, #tpu.memory_space<vmem>>, vector<1x2x32xf32>,
    %111 = vector.extract_strided_slice %106 {offsets = [0, 32], sizes = [2, 32], strides = [1, 1]} : vector<2x64xf32> to vector<2x32xf32>
    %c4 = arith.constant 4 : index
    %c0_36 = arith.constant 0 : index
    %c32_37 = arith.constant 32 : index
    %112 = vector.load %arg5[%c4, %c0_36, %c32_37] : memref<8x2x64xf32, #tpu.memory_space<vmem>>, vector<1x2x32xf32>
    %113 = vector.shape_cast %112 : vector<1x2x32xf32> to vector<2x32xf32>
    %114 = vector.shape_cast %111 : vector<2x32xf32> to vector<1x2x32xf32>
    tpu.vector_store %arg5[%c4, %c0_36, %c32_37], %114 {strides = array<i32>} : memref<8x2x64xf32, #tpu.memory_space<vmem>>, vector<1x2x32xf32>,
    %c4_38 = arith.constant 4 : index
    %c0_39 = arith.constant 0 : index
    %c0_40 = arith.constant 0 : index
    %115 = vector.load %arg0[%c4_38, %c0_39, %c0_40] : memref<8x2x256xf32, #tpu.memory_space<vmem>>, vector<1x2x256xf32>
    %116 = vector.shape_cast %115 : vector<1x2x256xf32> to vector<2x256xf32>
    %cst_41 = arith.constant dense<0.000000e+00> : vector<2x256xf32>
    %117 = tpu.matmul %106, %0, %cst_41 {dimension_numbers = #tpu.dot_dimension_numbers<[1], [0], [0], [1], [0, 0, 1, 1], [], []>} : vector<2x64xf32>, vector<64x256xf32>, vector<2x256xf32> -> vector<2x256xf32>
    %118 = arith.addf %116, %117 : vector<2x256xf32>
    %119 = vector.extract_strided_slice %118 {offsets = [0, 0], sizes = [2, 192], strides = [1, 1]} : vector<2x256xf32> to vector<2x192xf32>
    %120 = arith.negf %119 : vector<2x192xf32>
    %121 = math.exp %120 : vector<2x192xf32>
    %cst_42 = arith.constant 1.000000e+00 : f32
    %122 = vector.broadcast %cst_42 : f32 to vector<2x192xf32>
    %123 = arith.addf %122, %121 : vector<2x192xf32>
    %124 = arith.divf %122, %123 : vector<2x192xf32>
    %125 = vector.extract_strided_slice %118 {offsets = [0, 192], sizes = [2, 64], strides = [1, 1]} : vector<2x256xf32> to vector<2x64xf32>
    %126 = math.tanh %125 : vector<2x64xf32>
    %127 = vector.extract_strided_slice %124 {offsets = [0, 64], sizes = [2, 64], strides = [1, 1]} : vector<2x192xf32> to vector<2x64xf32>
    %128 = arith.mulf %127, %103 : vector<2x64xf32>
    %129 = vector.extract_strided_slice %124 {offsets = [0, 0], sizes = [2, 64], strides = [1, 1]} : vector<2x192xf32> to vector<2x64xf32>
    %130 = arith.mulf %129, %126 : vector<2x64xf32>
    %131 = arith.addf %128, %130 : vector<2x64xf32>
    %132 = vector.extract_strided_slice %124 {offsets = [0, 128], sizes = [2, 64], strides = [1, 1]} : vector<2x192xf32> to vector<2x64xf32>
    %133 = math.tanh %131 : vector<2x64xf32>
    %134 = arith.mulf %132, %133 : vector<2x64xf32>
    %135 = vector.extract_strided_slice %134 {offsets = [0, 0], sizes = [2, 32], strides = [1, 1]} : vector<2x64xf32> to vector<2x32xf32>
    %c4_43 = arith.constant 4 : index
    %c0_44 = arith.constant 0 : index
    %c0_45 = arith.constant 0 : index
    %136 = vector.load %arg5[%c4_43, %c0_44, %c0_45] : memref<8x2x64xf32, #tpu.memory_space<vmem>>, vector<1x2x32xf32>
    %137 = vector.shape_cast %136 : vector<1x2x32xf32> to vector<2x32xf32>
    %138 = vector.shape_cast %135 : vector<2x32xf32> to vector<1x2x32xf32>
    tpu.vector_store %arg5[%c4_43, %c0_44, %c0_45], %138 {strides = array<i32>} : memref<8x2x64xf32, #tpu.memory_space<vmem>>, vector<1x2x32xf32>,
    %139 = vector.extract_strided_slice %134 {offsets = [0, 32], sizes = [2, 32], strides = [1, 1]} : vector<2x64xf32> to vector<2x32xf32>
    %c3_46 = arith.constant 3 : index
    %c0_47 = arith.constant 0 : index
    %c32_48 = arith.constant 32 : index
    %140 = vector.load %arg5[%c3_46, %c0_47, %c32_48] : memref<8x2x64xf32, #tpu.memory_space<vmem>>, vector<1x2x32xf32>
    %141 = vector.shape_cast %140 : vector<1x2x32xf32> to vector<2x32xf32>
    %142 = vector.shape_cast %139 : vector<2x32xf32> to vector<1x2x32xf32>
    tpu.vector_store %arg5[%c3_46, %c0_47, %c32_48], %142 {strides = array<i32>} : memref<8x2x64xf32, #tpu.memory_space<vmem>>, vector<1x2x32xf32>,
    %c5_49 = arith.constant 5 : index
    %c0_50 = arith.constant 0 : index
    %c0_51 = arith.constant 0 : index
    %143 = vector.load %arg0[%c5_49, %c0_50, %c0_51] : memref<8x2x256xf32, #tpu.memory_space<vmem>>, vector<1x2x256xf32>
    %144 = vector.shape_cast %143 : vector<1x2x256xf32> to vector<2x256xf32>
    %cst_52 = arith.constant dense<0.000000e+00> : vector<2x256xf32>
    %145 = tpu.matmul %134, %0, %cst_52 {dimension_numbers = #tpu.dot_dimension_numbers<[1], [0], [0], [1], [0, 0, 1, 1], [], []>} : vector<2x64xf32>, vector<64x256xf32>, vector<2x256xf32> -> vector<2x256xf32>
    %146 = arith.addf %144, %145 : vector<2x256xf32>
    %147 = vector.extract_strided_slice %146 {offsets = [0, 0], sizes = [2, 192], strides = [1, 1]} : vector<2x256xf32> to vector<2x192xf32>
    %148 = arith.negf %147 : vector<2x192xf32>
    %149 = math.exp %148 : vector<2x192xf32>
    %cst_53 = arith.constant 1.000000e+00 : f32
    %150 = vector.broadcast %cst_53 : f32 to vector<2x192xf32>
    %151 = arith.addf %150, %149 : vector<2x192xf32>
    %152 = arith.divf %150, %151 : vector<2x192xf32>
    %153 = vector.extract_strided_slice %146 {offsets = [0, 192], sizes = [2, 64], strides = [1, 1]} : vector<2x256xf32> to vector<2x64xf32>
    %154 = math.tanh %153 : vector<2x64xf32>
    %155 = vector.extract_strided_slice %152 {offsets = [0, 64], sizes = [2, 64], strides = [1, 1]} : vector<2x192xf32> to vector<2x64xf32>
    %156 = arith.mulf %155, %131 : vector<2x64xf32>
    %157 = vector.extract_strided_slice %152 {offsets = [0, 0], sizes = [2, 64], strides = [1, 1]} : vector<2x192xf32> to vector<2x64xf32>
    %158 = arith.mulf %157, %154 : vector<2x64xf32>
    %159 = arith.addf %156, %158 : vector<2x64xf32>
    %160 = vector.extract_strided_slice %152 {offsets = [0, 128], sizes = [2, 64], strides = [1, 1]} : vector<2x192xf32> to vector<2x64xf32>
    %161 = math.tanh %159 : vector<2x64xf32>
    %162 = arith.mulf %160, %161 : vector<2x64xf32>
    %163 = vector.extract_strided_slice %162 {offsets = [0, 0], sizes = [2, 32], strides = [1, 1]} : vector<2x64xf32> to vector<2x32xf32>
    %c5_54 = arith.constant 5 : index
    %c0_55 = arith.constant 0 : index
    %c0_56 = arith.constant 0 : index
    %164 = vector.load %arg5[%c5_54, %c0_55, %c0_56] : memref<8x2x64xf32, #tpu.memory_space<vmem>>, vector<1x2x32xf32>
    %165 = vector.shape_cast %164 : vector<1x2x32xf32> to vector<2x32xf32>
    %166 = vector.shape_cast %163 : vector<2x32xf32> to vector<1x2x32xf32>
    tpu.vector_store %arg5[%c5_54, %c0_55, %c0_56], %166 {strides = array<i32>} : memref<8x2x64xf32, #tpu.memory_space<vmem>>, vector<1x2x32xf32>,
    %167 = vector.extract_strided_slice %162 {offsets = [0, 32], sizes = [2, 32], strides = [1, 1]} : vector<2x64xf32> to vector<2x32xf32>
    %c2_57 = arith.constant 2 : index
    %c0_58 = arith.constant 0 : index
    %c32_59 = arith.constant 32 : index
    %168 = vector.load %arg5[%c2_57, %c0_58, %c32_59] : memref<8x2x64xf32, #tpu.memory_space<vmem>>, vector<1x2x32xf32>
    %169 = vector.shape_cast %168 : vector<1x2x32xf32> to vector<2x32xf32>
    %170 = vector.shape_cast %167 : vector<2x32xf32> to vector<1x2x32xf32>
    tpu.vector_store %arg5[%c2_57, %c0_58, %c32_59], %170 {strides = array<i32>} : memref<8x2x64xf32, #tpu.memory_space<vmem>>, vector<1x2x32xf32>,
    %c6_60 = arith.constant 6 : index
    %c0_61 = arith.constant 0 : index
    %c0_62 = arith.constant 0 : index
    %171 = vector.load %arg0[%c6_60, %c0_61, %c0_62] : memref<8x2x256xf32, #tpu.memory_space<vmem>>, vector<1x2x256xf32>
    %172 = vector.shape_cast %171 : vector<1x2x256xf32> to vector<2x256xf32>
    %cst_63 = arith.constant dense<0.000000e+00> : vector<2x256xf32>
    %173 = tpu.matmul %162, %0, %cst_63 {dimension_numbers = #tpu.dot_dimension_numbers<[1], [0], [0], [1], [0, 0, 1, 1], [], []>} : vector<2x64xf32>, vector<64x256xf32>, vector<2x256xf32> -> vector<2x256xf32>
    %174 = arith.addf %172, %173 : vector<2x256xf32>
    %175 = vector.extract_strided_slice %174 {offsets = [0, 0], sizes = [2, 192], strides = [1, 1]} : vector<2x256xf32> to vector<2x192xf32>
    %176 = arith.negf %175 : vector<2x192xf32>
    %177 = math.exp %176 : vector<2x192xf32>
    %cst_64 = arith.constant 1.000000e+00 : f32
    %178 = vector.broadcast %cst_64 : f32 to vector<2x192xf32>
    %179 = arith.addf %178, %177 : vector<2x192xf32>
    %180 = arith.divf %178, %179 : vector<2x192xf32>
    %181 = vector.extract_strided_slice %174 {offsets = [0, 192], sizes = [2, 64], strides = [1, 1]} : vector<2x256xf32> to vector<2x64xf32>
    %182 = math.tanh %181 : vector<2x64xf32>
    %183 = vector.extract_strided_slice %180 {offsets = [0, 64], sizes = [2, 64], strides = [1, 1]} : vector<2x192xf32> to vector<2x64xf32>
    %184 = arith.mulf %183, %159 : vector<2x64xf32>
    %185 = vector.extract_strided_slice %180 {offsets = [0, 0], sizes = [2, 64], strides = [1, 1]} : vector<2x192xf32> to vector<2x64xf32>
    %186 = arith.mulf %185, %182 : vector<2x64xf32>
    %187 = arith.addf %184, %186 : vector<2x64xf32>
    %188 = vector.extract_strided_slice %180 {offsets = [0, 128], sizes = [2, 64], strides = [1, 1]} : vector<2x192xf32> to vector<2x64xf32>
    %189 = math.tanh %187 : vector<2x64xf32>
    %190 = arith.mulf %188, %189 : vector<2x64xf32>
    %191 = vector.extract_strided_slice %190 {offsets = [0, 0], sizes = [2, 32], strides = [1, 1]} : vector<2x64xf32> to vector<2x32xf32>
    %c6_65 = arith.constant 6 : index
    %c0_66 = arith.constant 0 : index
    %c0_67 = arith.constant 0 : index
    %192 = vector.load %arg5[%c6_65, %c0_66, %c0_67] : memref<8x2x64xf32, #tpu.memory_space<vmem>>, vector<1x2x32xf32>
    %193 = vector.shape_cast %192 : vector<1x2x32xf32> to vector<2x32xf32>
    %194 = vector.shape_cast %191 : vector<2x32xf32> to vector<1x2x32xf32>
    tpu.vector_store %arg5[%c6_65, %c0_66, %c0_67], %194 {strides = array<i32>} : memref<8x2x64xf32, #tpu.memory_space<vmem>>, vector<1x2x32xf32>,
    %195 = vector.extract_strided_slice %190 {offsets = [0, 32], sizes = [2, 32], strides = [1, 1]} : vector<2x64xf32> to vector<2x32xf32>
    %c1_68 = arith.constant 1 : index
    %c0_69 = arith.constant 0 : index
    %c32_70 = arith.constant 32 : index
    %196 = vector.load %arg5[%c1_68, %c0_69, %c32_70] : memref<8x2x64xf32, #tpu.memory_space<vmem>>, vector<1x2x32xf32>
    %197 = vector.shape_cast %196 : vector<1x2x32xf32> to vector<2x32xf32>
    %198 = vector.shape_cast %195 : vector<2x32xf32> to vector<1x2x32xf32>
    tpu.vector_store %arg5[%c1_68, %c0_69, %c32_70], %198 {strides = array<i32>} : memref<8x2x64xf32, #tpu.memory_space<vmem>>, vector<1x2x32xf32>,
    %c7_71 = arith.constant 7 : index
    %c0_72 = arith.constant 0 : index
    %c0_73 = arith.constant 0 : index
    %199 = vector.load %arg0[%c7_71, %c0_72, %c0_73] : memref<8x2x256xf32, #tpu.memory_space<vmem>>, vector<1x2x256xf32>
    %200 = vector.shape_cast %199 : vector<1x2x256xf32> to vector<2x256xf32>
    %cst_74 = arith.constant dense<0.000000e+00> : vector<2x256xf32>
    %201 = tpu.matmul %190, %0, %cst_74 {dimension_numbers = #tpu.dot_dimension_numbers<[1], [0], [0], [1], [0, 0, 1, 1], [], []>} : vector<2x64xf32>, vector<64x256xf32>, vector<2x256xf32> -> vector<2x256xf32>
    %202 = arith.addf %200, %201 : vector<2x256xf32>
    %203 = vector.extract_strided_slice %202 {offsets = [0, 0], sizes = [2, 192], strides = [1, 1]} : vector<2x256xf32> to vector<2x192xf32>
    %204 = arith.negf %203 : vector<2x192xf32>
    %205 = math.exp %204 : vector<2x192xf32>
    %cst_75 = arith.constant 1.000000e+00 : f32
    %206 = vector.broadcast %cst_75 : f32 to vector<2x192xf32>
    %207 = arith.addf %206, %205 : vector<2x192xf32>
    %208 = arith.divf %206, %207 : vector<2x192xf32>
    %209 = vector.extract_strided_slice %202 {offsets = [0, 192], sizes = [2, 64], strides = [1, 1]} : vector<2x256xf32> to vector<2x64xf32>
    %210 = math.tanh %209 : vector<2x64xf32>
    %211 = vector.extract_strided_slice %208 {offsets = [0, 64], sizes = [2, 64], strides = [1, 1]} : vector<2x192xf32> to vector<2x64xf32>
    %212 = arith.mulf %211, %187 : vector<2x64xf32>
    %213 = vector.extract_strided_slice %208 {offsets = [0, 0], sizes = [2, 64], strides = [1, 1]} : vector<2x192xf32> to vector<2x64xf32>
    %214 = arith.mulf %213, %210 : vector<2x64xf32>
    %215 = arith.addf %212, %214 : vector<2x64xf32>
    %216 = vector.extract_strided_slice %208 {offsets = [0, 128], sizes = [2, 64], strides = [1, 1]} : vector<2x192xf32> to vector<2x64xf32>
    %217 = math.tanh %215 : vector<2x64xf32>
    %218 = arith.mulf %216, %217 : vector<2x64xf32>
    %219 = vector.extract_strided_slice %218 {offsets = [0, 0], sizes = [2, 32], strides = [1, 1]} : vector<2x64xf32> to vector<2x32xf32>
    %c7_76 = arith.constant 7 : index
    %c0_77 = arith.constant 0 : index
    %c0_78 = arith.constant 0 : index
    %220 = vector.load %arg5[%c7_76, %c0_77, %c0_78] : memref<8x2x64xf32, #tpu.memory_space<vmem>>, vector<1x2x32xf32>
    %221 = vector.shape_cast %220 : vector<1x2x32xf32> to vector<2x32xf32>
    %222 = vector.shape_cast %219 : vector<2x32xf32> to vector<1x2x32xf32>
    tpu.vector_store %arg5[%c7_76, %c0_77, %c0_78], %222 {strides = array<i32>} : memref<8x2x64xf32, #tpu.memory_space<vmem>>, vector<1x2x32xf32>,
    %223 = vector.extract_strided_slice %218 {offsets = [0, 32], sizes = [2, 32], strides = [1, 1]} : vector<2x64xf32> to vector<2x32xf32>
    %c0_79 = arith.constant 0 : index
    %c0_80 = arith.constant 0 : index
    %c32_81 = arith.constant 32 : index
    %224 = vector.load %arg5[%c0_79, %c0_80, %c32_81] : memref<8x2x64xf32, #tpu.memory_space<vmem>>, vector<1x2x32xf32>
    %225 = vector.shape_cast %224 : vector<1x2x32xf32> to vector<2x32xf32>
    %226 = vector.shape_cast %223 : vector<2x32xf32> to vector<1x2x32xf32>
    tpu.vector_store %arg5[%c0_79, %c0_80, %c32_81], %226 {strides = array<i32>} : memref<8x2x64xf32, #tpu.memory_space<vmem>>, vector<1x2x32xf32>,
    %c0_82 = arith.constant 0 : index
    %c0_83 = arith.constant 0 : index
    %c0_84 = arith.constant 0 : index
    %227 = vector.load %arg5[%c0_82, %c0_83, %c0_84] : memref<8x2x64xf32, #tpu.memory_space<vmem>>, vector<8x2x64xf32>
    %228 = vector.shape_cast %227 : vector<8x2x64xf32> to vector<16x64xf32>
    %c0_85 = arith.constant 0 : index
    %c0_86 = arith.constant 0 : index
    %229 = vector.load %arg2[%c0_85, %c0_86] : memref<64x128xf32, #tpu.memory_space<vmem>>, vector<64x128xf32>
    %cst_87 = arith.constant dense<0.000000e+00> : vector<16x128xf32>
    %230 = tpu.matmul %228, %229, %cst_87 {dimension_numbers = #tpu.dot_dimension_numbers<[1], [0], [0], [1], [0, 0, 1, 1], [], []>} : vector<16x64xf32>, vector<64x128xf32>, vector<16x128xf32> -> vector<16x128xf32>
    %c0_88 = arith.constant 0 : index
    %c0_89 = arith.constant 0 : index
    %231 = vector.load %arg3[%c0_88, %c0_89] : memref<1x128xf32, #tpu.memory_space<vmem>>, vector<1x128xf32>
    %232 = vector.broadcast %231 : vector<1x128xf32> to vector<16x128xf32>
    %233 = arith.addf %230, %232 : vector<16x128xf32>
    %cst_90 = arith.constant dense<0xFF800000> : vector<16xf32>
    %234 = vector.multi_reduction <maximumf>, %233, %cst_90 [1] : vector<16x128xf32> to vector<16xf32>
    %235 = vector.shape_cast %234 : vector<16xf32> to vector<16x1xf32>
    %236 = vector.broadcast %235 : vector<16x1xf32> to vector<16x128xf32>
    %237 = arith.subf %233, %236 : vector<16x128xf32>
    %238 = math.exp %237 : vector<16x128xf32>
    %cst_91 = arith.constant dense<0.000000e+00> : vector<16xf32>
    %239 = vector.multi_reduction <add>, %238, %cst_91 [1] : vector<16x128xf32> to vector<16xf32>
    %240 = vector.shape_cast %239 : vector<16xf32> to vector<16x1xf32>
    %241 = math.log %240 : vector<16x1xf32>
    %242 = vector.broadcast %241 : vector<16x1xf32> to vector<16x128xf32>
    %243 = arith.subf %237, %242 : vector<16x128xf32>
    %c0_92 = arith.constant 0 : index
    %c0_93 = arith.constant 0 : index
    %244 = vector.load %arg4[%c0_92, %c0_93] : memref<16x128xf32, #tpu.memory_space<vmem>>, vector<16x128xf32>
    tpu.vector_store %arg4[%c0_92, %c0_93], %243 {strides = array<i32>} : memref<16x128xf32, #tpu.memory_space<vmem>>, vector<16x128xf32>,
    return
  }
}

</mosaic_0001>

<llo_original>
// kernel: lstm_model_forward.1
$region0: #{lstm_model_forward.1}
  #allocation0 [shape = 'u32[]', space=smem, size = 0x4, offset = 0x4, fixed_abs, tag = 'smem constant byte address 0x4 - core index']
  #allocation1 [shape = 'u32[72,128]{1,0:T(1,128)}', space=vmem, size = 0x9000, scoped, tag = 'internal scratch']
  #allocation2 [shape = 'f32[8,2,64]{2,1,0:T(2,128)}', space=vmem, size = 0x2000, scoped, tag = 'scratch operand']
  %s0 = inlined_call_operand.vmem [shape: f32[8,2,256], index: 0, kind: input, shape index: {}]
  %s1 = inlined_call_operand.vmem [shape: f32[64,256], index: 1, kind: input, shape index: {}]
  %s2 = inlined_call_operand.vmem [shape: f32[64,128], index: 2, kind: input, shape index: {}]
  %s3 = inlined_call_operand.vmem [shape: f32[1,128], index: 3, kind: input, shape index: {}]
  %s4 = inlined_call_operand.vmem [shape: f32[16,128], index: 4, kind: output, shape index: {}]
  %s5 = sld [smem:[#allocation0]]
  $region26: #{lstm_model_forward.1} parent=0
    _
  %s7 = ssub.s32 1, %s5
  %s8 = scalar_select 0, %s7, %s5
  // Predicated region
  $region2: #{lstm_model_forward.1} parent=0 // pred_check
    _
  $region3: #{lstm_model_forward.1} parent=0 // pred_check_branch
    %10 = sbr.rel (0) target = $region5
  $region4: #{lstm_model_forward.1} parent=0 // pred_region
    _
  $region5: #{lstm_model_forward.1} parent=0 // pred_fallthru
    _
  // Predicated region
  $region6: #{lstm_model_forward.1} parent=0 // pred_check
    _
  $region7: #{lstm_model_forward.1} parent=0 // pred_check_branch
    %12 = sbr.rel (0) target = $region9
  $region8: #{lstm_model_forward.1} parent=0 // pred_region
    _
  $region9: #{lstm_model_forward.1} parent=0 // pred_fallthru
    _
  // Predicated region
  $region10: #{lstm_model_forward.1} parent=0 // pred_check
    _
  $region11: #{lstm_model_forward.1} parent=0 // pred_check_branch
    %14 = sbr.rel (0) target = $region13
  $region12: #{lstm_model_forward.1} parent=0 // pred_region
    _
  $region13: #{lstm_model_forward.1} parent=0 // pred_fallthru
    _
  // Predicated region
  $region14: #{lstm_model_forward.1} parent=0 // pred_check
    _
  $region15: #{lstm_model_forward.1} parent=0 // pred_check_branch
    %16 = sbr.rel (0) target = $region17
  $region16: #{lstm_model_forward.1} parent=0 // pred_region
    _
  $region17: #{lstm_model_forward.1} parent=0 // pred_fallthru
    _
  %v17 = vld [vmem:[%s1] sm:$0xff]
  %v18 = vld [vmem:[%s1 + $0x8] sm:$0xff]
  %v19 = vld [vmem:[%s1 + $0x10] sm:$0xff]
  %v20 = vld [vmem:[%s1 + $0x18] sm:$0xff]
  %v21 = vld [vmem:[%s1 + $0x20] sm:$0xff]
  %v22 = vld [vmem:[%s1 + $0x28] sm:$0xff]
  %v23 = vld [vmem:[%s1 + $0x30] sm:$0xff]
  %v24 = vld [vmem:[%s1 + $0x38] sm:$0xff]
  %v25 = vld [vmem:[%s1 + $0x40] sm:$0xff]
  %v26 = vld [vmem:[%s1 + $0x48] sm:$0xff]
  %v27 = vld [vmem:[%s1 + $0x50] sm:$0xff]
  %v28 = vld [vmem:[%s1 + $0x58] sm:$0xff]
  %v29 = vld [vmem:[%s1 + $0x60] sm:$0xff]
  %v30 = vld [vmem:[%s1 + $0x68] sm:$0xff]
  %v31 = vld [vmem:[%s1 + $0x70] sm:$0xff]
  %v32 = vld [vmem:[%s1 + $0x78] sm:$0xff]
  %v33 = vld [vmem:[%s0] sm:$0xf]
  %vm34 = vcmask 523264
  %v36 = vsel %vm34, 0.0, 0
  %38 = vmatpush.msra.mxu0 0.0
  %39 = vmatpush.msra.mxu0 0.0
  %40 = vmatpush.msra.mxu0 0.0
  %41 = vmatpush.msra.mxu0 0.0
  %42 = vmatpush.msra.mxu0 0.0
  %43 = vmatpush.msra.mxu0 0.0
  %44 = vmatpush.msra.mxu0 0.0
  %45 = vmatpush.msra.mxu0 0.0
  %46 = vmatpush.msra.mxu0 %v31
  %47 = vmatpush.msra.mxu0 %v29
  %48 = vmatpush.msra.mxu0 %v27
  %49 = vmatpush.msra.mxu0 %v25
  %50 = vmatpush.msra.mxu0 %v23
  %51 = vmatpush.msra.mxu0 %v21
  %52 = vmatpush.msra.mxu0 %v19
  %53 = vmatpush.msra.mxu0 %v17
  %54 = vmatmul.f32.gmra.mxu0 %v36
  %v55 = vpop.f32.mrf.mxu0
  %v56 = vadd.f32 0.0, %v55
  %57 = vdwg.mxu0
  %58 = vmatpush.msra.mxu0 0.0
  %59 = vmatpush.msra.mxu0 0.0
  %60 = vmatpush.msra.mxu0 0.0
  %61 = vmatpush.msra.mxu0 0.0
  %62 = vmatpush.msra.mxu0 0.0
  %63 = vmatpush.msra.mxu0 0.0
  %64 = vmatpush.msra.mxu0 0.0
  %65 = vmatpush.msra.mxu0 0.0
  %66 = vmatpush.msra.mxu0 %v32
  %67 = vmatpush.msra.mxu0 %v30
  %68 = vmatpush.msra.mxu0 %v28
  %69 = vmatpush.msra.mxu0 %v26
  %70 = vmatpush.msra.mxu0 %v24
  %71 = vmatpush.msra.mxu0 %v22
  %72 = vmatpush.msra.mxu0 %v20
  %73 = vmatpush.msra.mxu0 %v18
  %74 = vmatmul.f32.gmra.mxu0 %v36
  %v75 = vpop.f32.mrf.mxu0
  %v76 = vadd.f32 0.0, %v75
  %77 = vdwg.mxu0
  %v80 = vrot.slane %v76, 6
  %vm81 = vcmask 1041408
  %v82 = vsel %vm81, %v56, %v80
  %v84 = vadd.f32 %v33, %v82
  %v85 = vxor.u32 %v84, 2147483648
  %v86 = vmul.f32 %v85, 1.442695
  %v87 = vpow.pop %v86
  %v88 = vadd.f32 %v87, 1.0
  %v89 = vrcp.pop %v88
  %v90 = vmul.f32 %v88, %v89
  %v91 = vsub.f32 1.0, %v90
  %v92 = vmul.f32 %v89, %v91
  %v93 = vadd.f32 %v89, %v92
  %vm94 = vweird.f32 %v88
  %vm95 = vweird.f32 %v89
  %vm96 = vmor %vm94, %vm95
  %v97 = vsel %vm96, %v89, %v93
  %v98 = vand.u32 2147483647, %v88
  %vm99 = vcmp.eq.f32.partialorder %v98, 8.507059e+37
  %v100 = vand.u32 %v88, 2147483648
  %v101 = vor.u32 1.1754944e-38, %v100
  %v102 = vsel %vm99, %v101, %v97
  %v103 = vmul.f32 1.0, %v102
  %105 = vrot.lane.b32.xlu0 %v84, 64
  %v106 = vpop.permute.xlu0 %105
  %v107 = vrot.slane %v106, 2
  %v109 = vtanh.pop %v107
  %v110 = vmul.f32 %v103, 0.0
  %v111 = vmul.f32 %v103, %v109
  %113 = vrot.lane.b32.xlu0 %v111, 64
  %v114 = vpop.permute.xlu0 %113
  %v116 = vadd.f32 %v110, %v114
  %v117 = vtanh.pop %v116
  %v119 = vrot.slane %v103, 2
  %122 = vrot.lane.b32.xlu0 %v117, 64
  %v123 = vpop.permute.xlu0 %122
  %v125 = vmul.f32 %v119, %v123
  %vm126 = vcmask 254976
  %127 = vst.msk [vmem:[#allocation2] sm:$0x3] %vm126, %v125
  %s128 = scalar_lea.vmem [#allocation2], 14
  %vm129 = vcmask 517376
  %130 = vst.msk [vmem:[%s128] sm:$0x3] %vm129, %v125
  %s131 = scalar_lea.vmem %s0, 4
  %v132 = vld [vmem:[%s131] sm:$0xf]
  %v134 = vsel %vm34, %v125, 0
  %136 = vmatpush.msra.mxu0 0.0
  %137 = vmatpush.msra.mxu0 0.0
  %138 = vmatpush.msra.mxu0 0.0
  %139 = vmatpush.msra.mxu0 0.0
  %140 = vmatpush.msra.mxu0 0.0
  %141 = vmatpush.msra.mxu0 0.0
  %142 = vmatpush.msra.mxu0 0.0
  %143 = vmatpush.msra.mxu0 0.0
  %144 = vmatpush.msra.mxu0 %v31
  %145 = vmatpush.msra.mxu0 %v29
  %146 = vmatpush.msra.mxu0 %v27
  %147 = vmatpush.msra.mxu0 %v25
  %148 = vmatpush.msra.mxu0 %v23
  %149 = vmatpush.msra.mxu0 %v21
  %150 = vmatpush.msra.mxu0 %v19
  %151 = vmatpush.msra.mxu0 %v17
  %152 = vmatmul.f32.gmra.mxu0 %v134
  %v153 = vpop.f32.mrf.mxu0
  %v154 = vadd.f32 0.0, %v153
  %155 = vdwg.mxu0
  %156 = vmatpush.msra.mxu0 0.0
  %157 = vmatpush.msra.mxu0 0.0
  %158 = vmatpush.msra.mxu0 0.0
  %159 = vmatpush.msra.mxu0 0.0
  %160 = vmatpush.msra.mxu0 0.0
  %161 = vmatpush.msra.mxu0 0.0
  %162 = vmatpush.msra.mxu0 0.0
  %163 = vmatpush.msra.mxu0 0.0
  %164 = vmatpush.msra.mxu0 %v32
  %165 = vmatpush.msra.mxu0 %v30
  %166 = vmatpush.msra.mxu0 %v28
  %167 = vmatpush.msra.mxu0 %v26
  %168 = vmatpush.msra.mxu0 %v24
  %169 = vmatpush.msra.mxu0 %v22
  %170 = vmatpush.msra.mxu0 %v20
  %171 = vmatpush.msra.mxu0 %v18
  %172 = vmatmul.f32.gmra.mxu0 %v134
  %v173 = vpop.f32.mrf.mxu0
  %v174 = vadd.f32 0.0, %v173
  %175 = vdwg.mxu0
  %v178 = vrot.slane %v174, 6
  %v179 = vsel %vm81, %v154, %v178
  %v181 = vadd.f32 %v132, %v179
  %v182 = vxor.u32 %v181, 2147483648
  %v183 = vmul.f32 %v182, 1.442695
  %v184 = vpow.pop %v183
  %v185 = vadd.f32 %v184, 1.0
  %v186 = vrcp.pop %v185
  %v187 = vmul.f32 %v185, %v186
  %v188 = vsub.f32 1.0, %v187
  %v189 = vmul.f32 %v186, %v188
  %v190 = vadd.f32 %v186, %v189
  %vm191 = vweird.f32 %v185
  %vm192 = vweird.f32 %v186
  %vm193 = vmor %vm191, %vm192
  %v194 = vsel %vm193, %v186, %v190
  %v195 = vand.u32 2147483647, %v185
  %vm196 = vcmp.eq.f32.partialorder %v195, 8.507059e+37
  %v197 = vand.u32 %v185, 2147483648
  %v198 = vor.u32 1.1754944e-38, %v197
  %v199 = vsel %vm196, %v198, %v194
  %v200 = vmul.f32 1.0, %v199
  %202 = vrot.lane.b32.xlu0 %v181, 64
  %v203 = vpop.permute.xlu0 %202
  %v204 = vrot.slane %v203, 2
  %v206 = vtanh.pop %v204
  %v207 = vmul.f32 %v200, %v116
  %v208 = vmul.f32 %v200, %v206
  %210 = vrot.lane.b32.xlu0 %v208, 64
  %v211 = vpop.permute.xlu0 %210
  %v213 = vadd.f32 %v207, %v211
  %v214 = vtanh.pop %v213
  %v216 = vrot.slane %v200, 2
  %219 = vrot.lane.b32.xlu0 %v214, 64
  %v220 = vpop.permute.xlu0 %219
  %v222 = vmul.f32 %v216, %v220
  %s223 = scalar_lea.vmem [#allocation2], 2
  %224 = vst.msk [vmem:[%s223] sm:$0x3] %vm126, %v222
  %s225 = scalar_lea.vmem [#allocation2], 12
  %226 = vst.msk [vmem:[%s225] sm:$0x3] %vm129, %v222
  %s227 = scalar_lea.vmem %s0, 8
  %v228 = vld [vmem:[%s227] sm:$0xf]
  %v230 = vsel %vm34, %v222, 0
  %232 = vmatpush.msra.mxu0 0.0
  %233 = vmatpush.msra.mxu0 0.0
  %234 = vmatpush.msra.mxu0 0.0
  %235 = vmatpush.msra.mxu0 0.0
  %236 = vmatpush.msra.mxu0 0.0
  %237 = vmatpush.msra.mxu0 0.0
  %238 = vmatpush.msra.mxu0 0.0
  %239 = vmatpush.msra.mxu0 0.0
  %240 = vmatpush.msra.mxu0 %v31
  %241 = vmatpush.msra.mxu0 %v29
  %242 = vmatpush.msra.mxu0 %v27
  %243 = vmatpush.msra.mxu0 %v25
  %244 = vmatpush.msra.mxu0 %v23
  %245 = vmatpush.msra.mxu0 %v21
  %246 = vmatpush.msra.mxu0 %v19
  %247 = vmatpush.msra.mxu0 %v17
  %248 = vmatmul.f32.gmra.mxu0 %v230
  %v249 = vpop.f32.mrf.mxu0
  %v250 = vadd.f32 0.0, %v249
  %251 = vdwg.mxu0
  %252 = vmatpush.msra.mxu0 0.0
  %253 = vmatpush.msra.mxu0 0.0
  %254 = vmatpush.msra.mxu0 0.0
  %255 = vmatpush.msra.mxu0 0.0
  %256 = vmatpush.msra.mxu0 0.0
  %257 = vmatpush.msra.mxu0 0.0
  %258 = vmatpush.msra.mxu0 0.0
  %259 = vmatpush.msra.mxu0 0.0
  %260 = vmatpush.msra.mxu0 %v32
  %261 = vmatpush.msra.mxu0 %v30
  %262 = vmatpush.msra.mxu0 %v28
  %263 = vmatpush.msra.mxu0 %v26
  %264 = vmatpush.msra.mxu0 %v24
  %265 = vmatpush.msra.mxu0 %v22
  %266 = vmatpush.msra.mxu0 %v20
  %267 = vmatpush.msra.mxu0 %v18
  %268 = vmatmul.f32.gmra.mxu0 %v230
  %v269 = vpop.f32.mrf.mxu0
  %v270 = vadd.f32 0.0, %v269
  %271 = vdwg.mxu0
  %v274 = vrot.slane %v270, 6
  %v275 = vsel %vm81, %v250, %v274
  %v277 = vadd.f32 %v228, %v275
  %v278 = vxor.u32 %v277, 2147483648
  %v279 = vmul.f32 %v278, 1.442695
  %v280 = vpow.pop %v279
  %v281 = vadd.f32 %v280, 1.0
  %v282 = vrcp.pop %v281
  %v283 = vmul.f32 %v281, %v282
  %v284 = vsub.f32 1.0, %v283
  %v285 = vmul.f32 %v282, %v284
  %v286 = vadd.f32 %v282, %v285
  %vm287 = vweird.f32 %v281
  %vm288 = vweird.f32 %v282
  %vm289 = vmor %vm287, %vm288
  %v290 = vsel %vm289, %v282, %v286
  %v291 = vand.u32 2147483647, %v281
  %vm292 = vcmp.eq.f32.partialorder %v291, 8.507059e+37
  %v293 = vand.u32 %v281, 2147483648
  %v294 = vor.u32 1.1754944e-38, %v293
  %v295 = vsel %vm292, %v294, %v290
  %v296 = vmul.f32 1.0, %v295
  %298 = vrot.lane.b32.xlu0 %v277, 64
  %v299 = vpop.permute.xlu0 %298
  %v300 = vrot.slane %v299, 2
  %v302 = vtanh.pop %v300
  %v303 = vmul.f32 %v296, %v213
  %v304 = vmul.f32 %v296, %v302
  %306 = vrot.lane.b32.xlu0 %v304, 64
  %v307 = vpop.permute.xlu0 %306
  %v309 = vadd.f32 %v303, %v307
  %v310 = vtanh.pop %v309
  %v312 = vrot.slane %v296, 2
  %315 = vrot.lane.b32.xlu0 %v310, 64
  %v316 = vpop.permute.xlu0 %315
  %v318 = vmul.f32 %v312, %v316
  %s319 = scalar_lea.vmem [#allocation2], 4
  %320 = vst.msk [vmem:[%s319] sm:$0x3] %vm126, %v318
  %s321 = scalar_lea.vmem [#allocation2], 10
  %322 = vst.msk [vmem:[%s321] sm:$0x3] %vm129, %v318
  %s323 = scalar_lea.vmem %s0, 12
  %v324 = vld [vmem:[%s323] sm:$0xf]
  %v326 = vsel %vm34, %v318, 0
  %328 = vmatpush.msra.mxu0 0.0
  %329 = vmatpush.msra.mxu0 0.0
  %330 = vmatpush.msra.mxu0 0.0
  %331 = vmatpush.msra.mxu0 0.0
  %332 = vmatpush.msra.mxu0 0.0
  %333 = vmatpush.msra.mxu0 0.0
  %334 = vmatpush.msra.mxu0 0.0
  %335 = vmatpush.msra.mxu0 0.0
  %336 = vmatpush.msra.mxu0 %v31
  %337 = vmatpush.msra.mxu0 %v29
  %338 = vmatpush.msra.mxu0 %v27
  %339 = vmatpush.msra.mxu0 %v25
  %340 = vmatpush.msra.mxu0 %v23
  %341 = vmatpush.msra.mxu0 %v21
  %342 = vmatpush.msra.mxu0 %v19
  %343 = vmatpush.msra.mxu0 %v17
  %344 = vmatmul.f32.gmra.mxu0 %v326
  %v345 = vpop.f32.mrf.mxu0
  %v346 = vadd.f32 0.0, %v345
  %347 = vdwg.mxu0
  %348 = vmatpush.msra.mxu0 0.0
  %349 = vmatpush.msra.mxu0 0.0
  %350 = vmatpush.msra.mxu0 0.0
  %351 = vmatpush.msra.mxu0 0.0
  %352 = vmatpush.msra.mxu0 0.0
  %353 = vmatpush.msra.mxu0 0.0
  %354 = vmatpush.msra.mxu0 0.0
  %355 = vmatpush.msra.mxu0 0.0
  %356 = vmatpush.msra.mxu0 %v32
  %357 = vmatpush.msra.mxu0 %v30
  %358 = vmatpush.msra.mxu0 %v28
  %359 = vmatpush.msra.mxu0 %v26
  %360 = vmatpush.msra.mxu0 %v24
  %361 = vmatpush.msra.mxu0 %v22
  %362 = vmatpush.msra.mxu0 %v20
  %363 = vmatpush.msra.mxu0 %v18
  %364 = vmatmul.f32.gmra.mxu0 %v326
  %v365 = vpop.f32.mrf.mxu0
  %v366 = vadd.f32 0.0, %v365
  %367 = vdwg.mxu0
  %v370 = vrot.slane %v366, 6
  %v371 = vsel %vm81, %v346, %v370
  %v373 = vadd.f32 %v324, %v371
  %v374 = vxor.u32 %v373, 2147483648
  %v375 = vmul.f32 %v374, 1.442695
  %v376 = vpow.pop %v375
  %v377 = vadd.f32 %v376, 1.0
  %v378 = vrcp.pop %v377
  %v379 = vmul.f32 %v377, %v378
  %v380 = vsub.f32 1.0, %v379
  %v381 = vmul.f32 %v378, %v380
  %v382 = vadd.f32 %v378, %v381
  %vm383 = vweird.f32 %v377
  %vm384 = vweird.f32 %v378
  %vm385 = vmor %vm383, %vm384
  %v386 = vsel %vm385, %v378, %v382
  %v387 = vand.u32 2147483647, %v377
  %vm388 = vcmp.eq.f32.partialorder %v387, 8.507059e+37
  %v389 = vand.u32 %v377, 2147483648
  %v390 = vor.u32 1.1754944e-38, %v389
  %v391 = vsel %vm388, %v390, %v386
  %v392 = vmul.f32 1.0, %v391
  %394 = vrot.lane.b32.xlu0 %v373, 64
  %v395 = vpop.permute.xlu0 %394
  %v396 = vrot.slane %v395, 2
  %v398 = vtanh.pop %v396
  %v399 = vmul.f32 %v392, %v309
  %v400 = vmul.f32 %v392, %v398
  %402 = vrot.lane.b32.xlu0 %v400, 64
  %v403 = vpop.permute.xlu0 %402
  %v405 = vadd.f32 %v399, %v403
  %v406 = vtanh.pop %v405
  %v408 = vrot.slane %v392, 2
  %411 = vrot.lane.b32.xlu0 %v406, 64
  %v412 = vpop.permute.xlu0 %411
  %v414 = vmul.f32 %v408, %v412
  %s415 = scalar_lea.vmem [#allocation2], 6
  %416 = vst.msk [vmem:[%s415] sm:$0x3] %vm126, %v414
  %s417 = scalar_lea.vmem [#allocation2], 8
  %418 = vst.msk [vmem:[%s417] sm:$0x3] %vm129, %v414
  %s419 = scalar_lea.vmem %s0, 16
  %v420 = vld [vmem:[%s419] sm:$0xf]
  %v422 = vsel %vm34, %v414, 0
  %424 = vmatpush.msra.mxu0 0.0
  %425 = vmatpush.msra.mxu0 0.0
  %426 = vmatpush.msra.mxu0 0.0
  %427 = vmatpush.msra.mxu0 0.0
  %428 = vmatpush.msra.mxu0 0.0
  %429 = vmatpush.msra.mxu0 0.0
  %430 = vmatpush.msra.mxu0 0.0
  %431 = vmatpush.msra.mxu0 0.0
  %432 = vmatpush.msra.mxu0 %v31
  %433 = vmatpush.msra.mxu0 %v29
  %434 = vmatpush.msra.mxu0 %v27
  %435 = vmatpush.msra.mxu0 %v25
  %436 = vmatpush.msra.mxu0 %v23
  %437 = vmatpush.msra.mxu0 %v21
  %438 = vmatpush.msra.mxu0 %v19
  %439 = vmatpush.msra.mxu0 %v17
  %440 = vmatmul.f32.gmra.mxu0 %v422
  %v441 = vpop.f32.mrf.mxu0
  %v442 = vadd.f32 0.0, %v441
  %443 = vdwg.mxu0
  %444 = vmatpush.msra.mxu0 0.0
  %445 = vmatpush.msra.mxu0 0.0
  %446 = vmatpush.msra.mxu0 0.0
  %447 = vmatpush.msra.mxu0 0.0
  %448 = vmatpush.msra.mxu0 0.0
  %449 = vmatpush.msra.mxu0 0.0
  %450 = vmatpush.msra.mxu0 0.0
  %451 = vmatpush.msra.mxu0 0.0
  %452 = vmatpush.msra.mxu0 %v32
  %453 = vmatpush.msra.mxu0 %v30
  %454 = vmatpush.msra.mxu0 %v28
  %455 = vmatpush.msra.mxu0 %v26
  %456 = vmatpush.msra.mxu0 %v24
  %457 = vmatpush.msra.mxu0 %v22
  %458 = vmatpush.msra.mxu0 %v20
  %459 = vmatpush.msra.mxu0 %v18
  %460 = vmatmul.f32.gmra.mxu0 %v422
  %v461 = vpop.f32.mrf.mxu0
  %v462 = vadd.f32 0.0, %v461
  %463 = vdwg.mxu0
  %v466 = vrot.slane %v462, 6
  %v467 = vsel %vm81, %v442, %v466
  %v469 = vadd.f32 %v420, %v467
  %v470 = vxor.u32 %v469, 2147483648
  %v471 = vmul.f32 %v470, 1.442695
  %v472 = vpow.pop %v471
  %v473 = vadd.f32 %v472, 1.0
  %v474 = vrcp.pop %v473
  %v475 = vmul.f32 %v473, %v474
  %v476 = vsub.f32 1.0, %v475
  %v477 = vmul.f32 %v474, %v476
  %v478 = vadd.f32 %v474, %v477
  %vm479 = vweird.f32 %v473
  %vm480 = vweird.f32 %v474
  %vm481 = vmor %vm479, %vm480
  %v482 = vsel %vm481, %v474, %v478
  %v483 = vand.u32 2147483647, %v473
  %vm484 = vcmp.eq.f32.partialorder %v483, 8.507059e+37
  %v485 = vand.u32 %v473, 2147483648
  %v486 = vor.u32 1.1754944e-38, %v485
  %v487 = vsel %vm484, %v486, %v482
  %v488 = vmul.f32 1.0, %v487
  %490 = vrot.lane.b32.xlu0 %v469, 64
  %v491 = vpop.permute.xlu0 %490
  %v492 = vrot.slane %v491, 2
  %v494 = vtanh.pop %v492
  %v495 = vmul.f32 %v488, %v405
  %v496 = vmul.f32 %v488, %v494
  %498 = vrot.lane.b32.xlu0 %v496, 64
  %v499 = vpop.permute.xlu0 %498
  %v501 = vadd.f32 %v495, %v499
  %v502 = vtanh.pop %v501
  %v504 = vrot.slane %v488, 2
  %507 = vrot.lane.b32.xlu0 %v502, 64
  %v508 = vpop.permute.xlu0 %507
  %v510 = vmul.f32 %v504, %v508
  %511 = vst.msk [vmem:[%s417] sm:$0x3] %vm126, %v510
  %512 = vst.msk [vmem:[%s415] sm:$0x3] %vm129, %v510
  %s513 = scalar_lea.vmem %s0, 20
  %v514 = vld [vmem:[%s513] sm:$0xf]
  %v516 = vsel %vm34, %v510, 0
  %518 = vmatpush.msra.mxu0 0.0
  %519 = vmatpush.msra.mxu0 0.0
  %520 = vmatpush.msra.mxu0 0.0
  %521 = vmatpush.msra.mxu0 0.0
  %522 = vmatpush.msra.mxu0 0.0
  %523 = vmatpush.msra.mxu0 0.0
  %524 = vmatpush.msra.mxu0 0.0
  %525 = vmatpush.msra.mxu0 0.0
  %526 = vmatpush.msra.mxu0 %v31
  %527 = vmatpush.msra.mxu0 %v29
  %528 = vmatpush.msra.mxu0 %v27
  %529 = vmatpush.msra.mxu0 %v25
  %530 = vmatpush.msra.mxu0 %v23
  %531 = vmatpush.msra.mxu0 %v21
  %532 = vmatpush.msra.mxu0 %v19
  %533 = vmatpush.msra.mxu0 %v17
  %534 = vmatmul.f32.gmra.mxu0 %v516
  %v535 = vpop.f32.mrf.mxu0
  %v536 = vadd.f32 0.0, %v535
  %537 = vdwg.mxu0
  %538 = vmatpush.msra.mxu0 0.0
  %539 = vmatpush.msra.mxu0 0.0
  %540 = vmatpush.msra.mxu0 0.0
  %541 = vmatpush.msra.mxu0 0.0
  %542 = vmatpush.msra.mxu0 0.0
  %543 = vmatpush.msra.mxu0 0.0
  %544 = vmatpush.msra.mxu0 0.0
  %545 = vmatpush.msra.mxu0 0.0
  %546 = vmatpush.msra.mxu0 %v32
  %547 = vmatpush.msra.mxu0 %v30
  %548 = vmatpush.msra.mxu0 %v28
  %549 = vmatpush.msra.mxu0 %v26
  %550 = vmatpush.msra.mxu0 %v24
  %551 = vmatpush.msra.mxu0 %v22
  %552 = vmatpush.msra.mxu0 %v20
  %553 = vmatpush.msra.mxu0 %v18
  %554 = vmatmul.f32.gmra.mxu0 %v516
  %v555 = vpop.f32.mrf.mxu0
  %v556 = vadd.f32 0.0, %v555
  %557 = vdwg.mxu0
  %v560 = vrot.slane %v556, 6
  %v561 = vsel %vm81, %v536, %v560
  %v563 = vadd.f32 %v514, %v561
  %v564 = vxor.u32 %v563, 2147483648
  %v565 = vmul.f32 %v564, 1.442695
  %v566 = vpow.pop %v565
  %v567 = vadd.f32 %v566, 1.0
  %v568 = vrcp.pop %v567
  %v569 = vmul.f32 %v567, %v568
  %v570 = vsub.f32 1.0, %v569
  %v571 = vmul.f32 %v568, %v570
  %v572 = vadd.f32 %v568, %v571
  %vm573 = vweird.f32 %v567
  %vm574 = vweird.f32 %v568
  %vm575 = vmor %vm573, %vm574
  %v576 = vsel %vm575, %v568, %v572
  %v577 = vand.u32 2147483647, %v567
  %vm578 = vcmp.eq.f32.partialorder %v577, 8.507059e+37
  %v579 = vand.u32 %v567, 2147483648
  %v580 = vor.u32 1.1754944e-38, %v579
  %v581 = vsel %vm578, %v580, %v576
  %v582 = vmul.f32 1.0, %v581
  %584 = vrot.lane.b32.xlu0 %v563, 64
  %v585 = vpop.permute.xlu0 %584
  %v586 = vrot.slane %v585, 2
  %v588 = vtanh.pop %v586
  %v589 = vmul.f32 %v582, %v501
  %v590 = vmul.f32 %v582, %v588
  %592 = vrot.lane.b32.xlu0 %v590, 64
  %v593 = vpop.permute.xlu0 %592
  %v595 = vadd.f32 %v589, %v593
  %v596 = vtanh.pop %v595
  %v598 = vrot.slane %v582, 2
  %601 = vrot.lane.b32.xlu0 %v596, 64
  %v602 = vpop.permute.xlu0 %601
  %v604 = vmul.f32 %v598, %v602
  %605 = vst.msk [vmem:[%s321] sm:$0x3] %vm126, %v604
  %606 = vst.msk [vmem:[%s319] sm:$0x3] %vm129, %v604
  %s607 = scalar_lea.vmem %s0, 24
  %v608 = vld [vmem:[%s607] sm:$0xf]
  %v610 = vsel %vm34, %v604, 0
  %612 = vmatpush.msra.mxu0 0.0
  %613 = vmatpush.msra.mxu0 0.0
  %614 = vmatpush.msra.mxu0 0.0
  %615 = vmatpush.msra.mxu0 0.0
  %616 = vmatpush.msra.mxu0 0.0
  %617 = vmatpush.msra.mxu0 0.0
  %618 = vmatpush.msra.mxu0 0.0
  %619 = vmatpush.msra.mxu0 0.0
  %620 = vmatpush.msra.mxu0 %v31
  %621 = vmatpush.msra.mxu0 %v29
  %622 = vmatpush.msra.mxu0 %v27
  %623 = vmatpush.msra.mxu0 %v25
  %624 = vmatpush.msra.mxu0 %v23
  %625 = vmatpush.msra.mxu0 %v21
  %626 = vmatpush.msra.mxu0 %v19
  %627 = vmatpush.msra.mxu0 %v17
  %628 = vmatmul.f32.gmra.mxu0 %v610
  %v629 = vpop.f32.mrf.mxu0
  %v630 = vadd.f32 0.0, %v629
  %631 = vdwg.mxu0
  %632 = vmatpush.msra.mxu0 0.0
  %633 = vmatpush.msra.mxu0 0.0
  %634 = vmatpush.msra.mxu0 0.0
  %635 = vmatpush.msra.mxu0 0.0
  %636 = vmatpush.msra.mxu0 0.0
  %637 = vmatpush.msra.mxu0 0.0
  %638 = vmatpush.msra.mxu0 0.0
  %639 = vmatpush.msra.mxu0 0.0
  %640 = vmatpush.msra.mxu0 %v32
  %641 = vmatpush.msra.mxu0 %v30
  %642 = vmatpush.msra.mxu0 %v28
  %643 = vmatpush.msra.mxu0 %v26
  %644 = vmatpush.msra.mxu0 %v24
  %645 = vmatpush.msra.mxu0 %v22
  %646 = vmatpush.msra.mxu0 %v20
  %647 = vmatpush.msra.mxu0 %v18
  %648 = vmatmul.f32.gmra.mxu0 %v610
  %v649 = vpop.f32.mrf.mxu0
  %v650 = vadd.f32 0.0, %v649
  %651 = vdwg.mxu0
  %v654 = vrot.slane %v650, 6
  %v655 = vsel %vm81, %v630, %v654
  %v657 = vadd.f32 %v608, %v655
  %v658 = vxor.u32 %v657, 2147483648
  %v659 = vmul.f32 %v658, 1.442695
  %v660 = vpow.pop %v659
  %v661 = vadd.f32 %v660, 1.0
  %v662 = vrcp.pop %v661
  %v663 = vmul.f32 %v661, %v662
  %v664 = vsub.f32 1.0, %v663
  %v665 = vmul.f32 %v662, %v664
  %v666 = vadd.f32 %v662, %v665
  %vm667 = vweird.f32 %v661
  %vm668 = vweird.f32 %v662
  %vm669 = vmor %vm667, %vm668
  %v670 = vsel %vm669, %v662, %v666
  %v671 = vand.u32 2147483647, %v661
  %vm672 = vcmp.eq.f32.partialorder %v671, 8.507059e+37
  %v673 = vand.u32 %v661, 2147483648
  %v674 = vor.u32 1.1754944e-38, %v673
  %v675 = vsel %vm672, %v674, %v670
  %v676 = vmul.f32 1.0, %v675
  %678 = vrot.lane.b32.xlu0 %v657, 64
  %v679 = vpop.permute.xlu0 %678
  %v680 = vrot.slane %v679, 2
  %v682 = vtanh.pop %v680
  %v683 = vmul.f32 %v676, %v595
  %v684 = vmul.f32 %v676, %v682
  %686 = vrot.lane.b32.xlu0 %v684, 64
  %v687 = vpop.permute.xlu0 %686
  %v689 = vadd.f32 %v683, %v687
  %v690 = vtanh.pop %v689
  %v692 = vrot.slane %v676, 2
  %695 = vrot.lane.b32.xlu0 %v690, 64
  %v696 = vpop.permute.xlu0 %695
  %v698 = vmul.f32 %v692, %v696
  %699 = vst.msk [vmem:[%s225] sm:$0x3] %vm126, %v698
  %700 = vst.msk [vmem:[%s223] sm:$0x3] %vm129, %v698
  %s701 = scalar_lea.vmem %s0, 28
  %v702 = vld [vmem:[%s701] sm:$0xf]
  %v704 = vsel %vm34, %v698, 0
  %706 = vmatpush.msra.mxu0 0.0
  %707 = vmatpush.msra.mxu0 0.0
  %708 = vmatpush.msra.mxu0 0.0
  %709 = vmatpush.msra.mxu0 0.0
  %710 = vmatpush.msra.mxu0 0.0
  %711 = vmatpush.msra.mxu0 0.0
  %712 = vmatpush.msra.mxu0 0.0
  %713 = vmatpush.msra.mxu0 0.0
  %714 = vmatpush.msra.mxu0 %v31
  %715 = vmatpush.msra.mxu0 %v29
  %716 = vmatpush.msra.mxu0 %v27
  %717 = vmatpush.msra.mxu0 %v25
  %718 = vmatpush.msra.mxu0 %v23
  %719 = vmatpush.msra.mxu0 %v21
  %720 = vmatpush.msra.mxu0 %v19
  %721 = vmatpush.msra.mxu0 %v17
  %722 = vmatmul.f32.gmra.mxu0 %v704
  %v723 = vpop.f32.mrf.mxu0
  %v724 = vadd.f32 0.0, %v723
  %725 = vdwg.mxu0
  %726 = vmatpush.msra.mxu0 0.0
  %727 = vmatpush.msra.mxu0 0.0
  %728 = vmatpush.msra.mxu0 0.0
  %729 = vmatpush.msra.mxu0 0.0
  %730 = vmatpush.msra.mxu0 0.0
  %731 = vmatpush.msra.mxu0 0.0
  %732 = vmatpush.msra.mxu0 0.0
  %733 = vmatpush.msra.mxu0 0.0
  %734 = vmatpush.msra.mxu0 %v32
  %735 = vmatpush.msra.mxu0 %v30
  %736 = vmatpush.msra.mxu0 %v28
  %737 = vmatpush.msra.mxu0 %v26
  %738 = vmatpush.msra.mxu0 %v24
  %739 = vmatpush.msra.mxu0 %v22
  %740 = vmatpush.msra.mxu0 %v20
  %741 = vmatpush.msra.mxu0 %v18
  %742 = vmatmul.f32.gmra.mxu0 %v704
  %v743 = vpop.f32.mrf.mxu0
  %v744 = vadd.f32 0.0, %v743
  %745 = vdwg.mxu0
  %v748 = vrot.slane %v744, 6
  %v749 = vsel %vm81, %v724, %v748
  %v751 = vadd.f32 %v702, %v749
  %v752 = vxor.u32 %v751, 2147483648
  %v753 = vmul.f32 %v752, 1.442695
  %v754 = vpow.pop %v753
  %v755 = vadd.f32 %v754, 1.0
  %v756 = vrcp.pop %v755
  %v757 = vmul.f32 %v755, %v756
  %v758 = vsub.f32 1.0, %v757
  %v759 = vmul.f32 %v756, %v758
  %v760 = vadd.f32 %v756, %v759
  %vm761 = vweird.f32 %v755
  %vm762 = vweird.f32 %v756
  %vm763 = vmor %vm761, %vm762
  %v764 = vsel %vm763, %v756, %v760
  %v765 = vand.u32 2147483647, %v755
  %vm766 = vcmp.eq.f32.partialorder %v765, 8.507059e+37
  %v767 = vand.u32 %v755, 2147483648
  %v768 = vor.u32 1.1754944e-38, %v767
  %v769 = vsel %vm766, %v768, %v764
  %v770 = vmul.f32 1.0, %v769
  %772 = vrot.lane.b32.xlu0 %v751, 64
  %v773 = vpop.permute.xlu0 %772
  %v774 = vrot.slane %v773, 2
  %v776 = vtanh.pop %v774
  %v777 = vmul.f32 %v770, %v689
  %v778 = vmul.f32 %v770, %v776
  %780 = vrot.lane.b32.xlu0 %v778, 64
  %v781 = vpop.permute.xlu0 %780
  %v783 = vadd.f32 %v777, %v781
  %v784 = vtanh.pop %v783
  %v786 = vrot.slane %v770, 2
  %789 = vrot.lane.b32.xlu0 %v784, 64
  %v790 = vpop.permute.xlu0 %789
  %v792 = vmul.f32 %v786, %v790
  %793 = vst.msk [vmem:[%s128] sm:$0x3] %vm126, %v792
  %794 = vst.msk [vmem:[#allocation2] sm:$0x3] %vm129, %v792
  %v795 = vld [vmem:[#allocation2] sm:$0x3]
  %v796 = vld [vmem:[#allocation2 + $0x2] sm:$0x3]
  %v797 = vld [vmem:[#allocation2 + $0x4] sm:$0x3]
  %v798 = vld [vmem:[#allocation2 + $0x6] sm:$0x3]
  %v799 = vld [vmem:[#allocation2 + $0x8] sm:$0x3]
  %v800 = vld [vmem:[#allocation2 + $0xa] sm:$0x3]
  %v801 = vld [vmem:[#allocation2 + $0xc] sm:$0x3]
  %v802 = vld [vmem:[#allocation2 + $0xe] sm:$0x3]
  %v803 = vld [vmem:[%s2] sm:$0xff]
  %v804 = vld [vmem:[%s2 + $0x8] sm:$0xff]
  %v805 = vld [vmem:[%s2 + $0x10] sm:$0xff]
  %v806 = vld [vmem:[%s2 + $0x18] sm:$0xff]
  %v807 = vld [vmem:[%s2 + $0x20] sm:$0xff]
  %v808 = vld [vmem:[%s2 + $0x28] sm:$0xff]
  %v809 = vld [vmem:[%s2 + $0x30] sm:$0xff]
  %v810 = vld [vmem:[%s2 + $0x38] sm:$0xff]
  %v811 = vld [vmem:[%s3] sm:$0x1]
  %v813 = vperm.slane %v811, 0
  %823 = vst [vmem:[#allocation1] ss:$4 sm:$0xff] %v795
  %s824 = scalar_lea.vmem [#allocation1], 1
  %825 = vst [vmem:[%s824] ss:$4 sm:$0xff] %v796
  %s826 = scalar_lea.vmem [#allocation1], 2
  %827 = vst [vmem:[%s826] ss:$4 sm:$0xff] %v797
  %s828 = scalar_lea.vmem [#allocation1], 3
  %829 = vst [vmem:[%s828] ss:$4 sm:$0xff] %v798
  %s830 = scalar_lea.vmem [#allocation1], 32
  %831 = vst [vmem:[%s830] ss:$4 sm:$0xff] %v799
  %s832 = scalar_lea.vmem [#allocation1], 33
  %833 = vst [vmem:[%s832] ss:$4 sm:$0xff] %v800
  %s834 = scalar_lea.vmem [#allocation1], 34
  %835 = vst [vmem:[%s834] ss:$4 sm:$0xff] %v801
  %s836 = scalar_lea.vmem [#allocation1], 35
  %837 = vst [vmem:[%s836] ss:$4 sm:$0xff] %v802
  %v838 = vld.sshfl [vmem:[#allocation1] sm:$0xff pattern:$0x73625140]
  %v839 = vld.sshfl [vmem:[#allocation1 + $0x20] sm:$0xff pattern:$0x73625140]
  %v840 = vsel %vm34, %v838, 0
  %v842 = vsel %vm34, %v839, 0
  %844 = vmatpush.msra.mxu0 0.0
  %845 = vmatpush.msra.mxu0 0.0
  %846 = vmatpush.msra.mxu0 0.0
  %847 = vmatpush.msra.mxu0 0.0
  %848 = vmatpush.msra.mxu0 0.0
  %849 = vmatpush.msra.mxu0 0.0
  %850 = vmatpush.msra.mxu0 0.0
  %851 = vmatpush.msra.mxu0 0.0
  %852 = vmatpush.msra.mxu0 %v810
  %853 = vmatpush.msra.mxu0 %v809
  %854 = vmatpush.msra.mxu0 %v808
  %855 = vmatpush.msra.mxu0 %v807
  %856 = vmatpush.msra.mxu0 %v806
  %857 = vmatpush.msra.mxu0 %v805
  %858 = vmatpush.msra.mxu0 %v804
  %859 = vmatpush.msra.mxu0 %v803
  %860 = vmatmul.f32.gmra.mxu0 %v840
  %v861 = vpop.f32.mrf.mxu0
  %v862 = vadd.f32 %v813, %v861
  %863 = vmatmul.f32.gmra.mxu0 %v842
  %v864 = vpop.f32.mrf.mxu0
  %v865 = vadd.f32 %v813, %v864
  %866 = vdwg.mxu0
  %867 = vmax.xlane.f32.xlu0 %v862
  %v868 = vpop.xlane.xlu0 %867
  %869 = vmax.xlane.f32.xlu0 %v865
  %v870 = vpop.xlane.xlu0 %869
  %v871 = vsub.f32 %v862, %v868
  %v872 = vsub.f32 %v865, %v870
  %v873 = vmul.f32 %v871, 1.442695
  %v874 = vpow.pop %v873
  %v875 = vmul.f32 %v872, 1.442695
  %v876 = vpow.pop %v875
  %877 = vadd.xlane.f32.xlu0 %v874
  %v878 = vpop.xlane.xlu0 %877
  %879 = vadd.xlane.f32.xlu0 %v876
  %v880 = vpop.xlane.xlu0 %879
  %v881 = vlog2.pop %v878
  %v882 = vmul.f32 %v881, 0.6931472
  %v883 = vlog2.pop %v880
  %v884 = vmul.f32 %v883, 0.6931472
  %v885 = vsub.f32 %v871, %v882
  %v886 = vsub.f32 %v872, %v884
  %887 = vst [vmem:[%s4] sm:$0xff] %v885
  %888 = vst [vmem:[%s4 + $0x8] sm:$0xff] %v886
  // Predicated region
  $region18: #{lstm_model_forward.1} parent=0 // pred_check
    _
  $region19: #{lstm_model_forward.1} parent=0 // pred_check_branch
    %890 = sbr.rel (0) target = $region21
  $region20: #{lstm_model_forward.1} parent=0 // pred_region
    _
  $region21: #{lstm_model_forward.1} parent=0 // pred_fallthru
    _
  // Predicated region
  $region22: #{lstm_model_forward.1} parent=0 // pred_check
    _
  $region23: #{lstm_model_forward.1} parent=0 // pred_check_branch
    %892 = sbr.rel (0) target = $region25
  $region24: #{lstm_model_forward.1} parent=0 // pred_region
    _
  $region25: #{lstm_model_forward.1} parent=0 // pred_fallthru
    _

</llo_original>
